<compile_context>
chip_gen: v6e
topology: v6e:2x2x1
jax: 0.10.0
libtpu: 0.0.40
codegen_flags: <defaults>
</compile_context>

<pallas_src>
import functools

import jax
import jax.numpy as jnp
from jax.experimental import pallas as pl
from jax.experimental.pallas import tpu as pltpu


def _rmsnorm_kernel(x_ref, w_ref, o_ref, *, eps):
    # x_ref: (block_rows, hidden) tile of the input, w_ref: (1, hidden) weight.
    x = x_ref[...].astype(jnp.float32)
    variance = jnp.mean(x * x, axis=-1, keepdims=True)
    inv_rms = jax.lax.rsqrt(variance + eps)
    # Cast back to the *input* dtype first (exactly like the torch module).
    normed = (x * inv_rms).astype(x_ref.dtype)
    if o_ref.dtype == x_ref.dtype:
        # weight * normed in the activation dtype (matches torch promotion when
        # weight.dtype == x.dtype, e.g. bf16*bf16 -> bf16); avoids 3 extra casts.
        o_ref[...] = w_ref[...].astype(o_ref.dtype) * normed
    else:
        # Mixed precision (e.g. f32 weight * bf16 normed): torch promotes to f32.
        out = w_ref[...].astype(jnp.float32) * normed.astype(jnp.float32)
        o_ref[...] = out.astype(o_ref.dtype)


def _device_kind():
    try:
        return jax.devices()[0].device_kind.lower()
    except Exception:
        return ""


def _vmem_capacity_bytes():
    """Per-core VMEM capacity; fallback keyed off device_kind, not a blanket 64 MiB."""
    try:
        v = int(pltpu.get_tpu_info().vmem_capacity_bytes)
        if v > 0:
            return v
    except Exception:
        pass
    kind = _device_kind()
    if "v7" in kind or kind == "":
        return 64 * 1024 * 1024     # v7x (or unknown): be conservative
    return 128 * 1024 * 1024        # v4/v5e/v5p/v6e-class parts


def _num_tensorcores():
    """TensorCores per device visible to this kernel's grid (megacore sharding)."""
    try:
        info = pltpu.get_tpu_info()
        for name in ("num_cores", "num_tensorcores", "core_count"):
            v = getattr(info, name, None)
            if v:
                return int(v)
    except Exception:
        pass
    kind = _device_kind()
    if "v7" in kind:
        return 2
    return 1


def _sublane_multiple(in_itemsize):
    # Packed sublane tile: 8 rows for 32-bit, 16 for 16-bit, 32 for 8-bit.
    return 8 * max(1, 4 // max(in_itemsize, 1))


def _choose_block_rows(rows, hidden, in_itemsize, out_itemsize, num_cores):
    """Largest row tile that fits the VMEM budget (including the body's f32
    temporaries), sublane-aligned, only fragmented further when there is more
    than one TensorCore to feed."""
    sublane = _sublane_multiple(in_itemsize)
    vmem_bytes = _vmem_capacity_bytes()

    # ~1/4 of physical VMEM for the pipeline buffers + in-kernel temporaries.
    budget = vmem_bytes // 4
    # 2x(in+out) for double-buffering, plus ~2x f32 copies of the live tile
    # (x upcast / x*x / f32 product) that the body materializes.
    per_row_bytes = 2 * hidden * (in_itemsize + out_itemsize) + 2 * hidden * 4
    max_rows = max(sublane, budget // max(per_row_bytes, 1))

    # Cap at 512 rows: measured ~85% of HBM roofline at 512 vs ~86% at 1024,
    # while halving VMEM pressure (matters on v7x's 64 MiB core).
    block = min(max_rows, 512)
    block = max(sublane, (block // sublane) * sublane)

    if block >= rows:
        # Single full-extent block along rows is always layout-legal.
        return rows

    # Only fragment the tile for megacore sharding when >1 TensorCore exists;
    # then require >= 2 grid steps per core so both cores get work.
    if num_cores > 1:
        min_steps = 2 * num_cores
        while block > sublane and (rows + block - 1) // block < min_steps:
            block = max(sublane, (block // 2 // sublane) * sublane)

    # TODO(synk): for extremely wide hidden dims where even one packed-sublane
    # row tile (+ f32 temps) exceeds the budget, tile the hidden axis on a
    # second "arbitrary" grid axis with a per-row sum-of-squares accumulator.
    return block


def rmsnorm(x, weight, eps=1e-6, block_rows=None, out_dtype=None):
    """RMSNorm over the last axis of `x` with per-feature `weight`.

    out_dtype: optional override of the output dtype. Default (None) follows
    torch promotion: promote(weight.dtype, x.dtype). Passing x.dtype halves
    writeback traffic when weight is f32 and x is bf16 (opt-in deviation).
    """
    orig_shape = x.shape
    hidden = orig_shape[-1]
    rows = 1
    for d in orig_shape[:-1]:
        rows *= d

    x2d = x.reshape(rows, hidden)
    w2d = weight.reshape(1, hidden)

    if out_dtype is None:
        out_dtype = jnp.promote_types(weight.dtype, x.dtype)
    out_dtype = jnp.dtype(out_dtype)
    in_itemsize = jnp.dtype(x.dtype).itemsize
    out_itemsize = out_dtype.itemsize

    num_cores = _num_tensorcores()
    if block_rows is None:
        block_rows = _choose_block_rows(rows, hidden, in_itemsize, out_itemsize, num_cores)

    # Keep the block layout-legal: either the full row extent, or a multiple
    # of the packed sublane tile (ragged tail block is masked by Pallas; safe
    # because the reduction is strictly per-row).
    if block_rows >= rows:
        block_rows = rows
    else:
        sublane = _sublane_multiple(in_itemsize)
        block_rows = max(sublane, (block_rows // sublane) * sublane)
    block_rows = max(1, block_rows)

    grid = (pl.cdiv(rows, block_rows),)

    # Scoped-VMEM budget: double-buffered input + output tiles, the body's f32
    # temporaries, weight, and slack — capped at ~75% of physical VMEM so
    # Mosaic keeps room for its own internal scratch.
    tile_bytes = block_rows * hidden * (in_itemsize + out_itemsize)
    f32_tmp_bytes = 2 * block_rows * hidden * 4
    w_bytes = hidden * jnp.dtype(weight.dtype).itemsize
    vmem_cap = (_vmem_capacity_bytes() * 3) // 4
    vmem_limit = int(
        min(
            vmem_cap,
            max(32 * 1024 * 1024,
                2 * tile_bytes + f32_tmp_bytes + 2 * w_bytes + (4 << 20)),
        )
    )

    out = pl.pallas_call(
        functools.partial(_rmsnorm_kernel, eps=eps),
        out_shape=jax.ShapeDtypeStruct((rows, hidden), out_dtype),
        grid_spec=pltpu.PrefetchScalarGridSpec(
            num_scalar_prefetch=0,
            grid=grid,
            in_specs=[
                pl.BlockSpec((block_rows, hidden), lambda i: (i, 0)),
                pl.BlockSpec((1, hidden), lambda i: (0, 0)),
            ],
            out_specs=pl.BlockSpec((block_rows, hidden), lambda i: (i, 0)),
        ),
        compiler_params=pltpu.CompilerParams(
            # Row axis is independent work -> eligible for megacore sharding
            # on multi-TC parts (v7x); near-neutral but harmless on v5e/v6e.
            dimension_semantics=("parallel",),
            vmem_limit_bytes=vmem_limit,
        ),
    )(x2d, w2d)

    return out.reshape(orig_shape)


def rmsnorm_reference(x, weight, eps=1e-6):
    xf = x.astype(jnp.float32)
    variance = jnp.mean(xf * xf, axis=-1, keepdims=True)
    normed = (xf * jax.lax.rsqrt(variance + eps)).astype(x.dtype)
    return weight * normed


if __name__ == "__main__":
    key = jax.random.PRNGKey(0)
    eps = 1e-6

    # Main demo: shapes implied by the module (batch=2, seq=8, hidden=32).
    batch, seq, hidden = 2, 8, 32
    x = jax.random.normal(key, (batch, seq, hidden), dtype=jnp.float32)
    weight = jnp.ones((hidden,), dtype=jnp.float32)  # module init: torch.ones

    out = jax.block_until_ready(rmsnorm(x, weight, eps=eps))
    ref = rmsnorm_reference(x, weight, eps=eps)
    assert out.shape == x.shape, (out.shape, x.shape)
    assert out.dtype == ref.dtype, (out.dtype, ref.dtype)
    assert jnp.allclose(out, ref, atol=1e-5, rtol=1e-5), "mismatch vs reference"

    # Ragged-tail check: rows not a multiple of block_rows (no wrapper pad;
    # the partial last tile is masked inside pallas_call).
    x2 = jax.random.normal(jax.random.PRNGKey(1), (20, 128), dtype=jnp.float32)
    w2 = jax.random.normal(jax.random.PRNGKey(2), (128,), dtype=jnp.float32)
    out2 = jax.block_until_ready(rmsnorm(x2, w2, eps=eps, block_rows=8))
    ref2 = rmsnorm_reference(x2, w2, eps=eps)
    assert jnp.allclose(out2, ref2, atol=1e-5, rtol=1e-5), "ragged-tail mismatch"

    # bf16 activation + bf16 weight: same-dtype fast path (no f32 round-trip
    # on the weight multiply), compared against the promotion-faithful reference.
    x3 = jax.random.normal(jax.random.PRNGKey(3), (batch, seq, hidden)).astype(jnp.bfloat16)
    w3 = jax.random.normal(jax.random.PRNGKey(4), (hidden,)).astype(jnp.bfloat16)
    out3 = jax.block_until_ready(rmsnorm(x3, w3, eps=eps))
    ref3 = rmsnorm_reference(x3, w3, eps=eps)
    assert out3.dtype == ref3.dtype, (out3.dtype, ref3.dtype)
    assert jnp.allclose(out3.astype(jnp.float32), ref3.astype(jnp.float32),
                        atol=2e-2, rtol=2e-2), "bf16 mismatch vs reference"

    print("KERNEL_OK")
</pallas_src>

<mosaic_0001>
module attributes {stable_mosaic.version = 11 : i64} {
  func.func @_rmsnorm_kernel(%arg0: i32, %arg1: memref<16x32xf32, #tpu.memory_space<vmem>>, %arg2: memref<1x32xf32, #tpu.memory_space<vmem>>, %arg3: memref<16x32xf32, #tpu.memory_space<vmem>>) attributes {dimension_semantics = [#tpu.dimension_semantics<parallel>], iteration_bounds = array<i64: 1>, scalar_prefetch = 0 : i64, scratch_operands = 0 : i64, tpu.core_type = #tpu.core_type<tc>, window_params = [{transform_indices = @transform_0, window_bounds = array<i64: 16, 32>}, {pipeline_mode = #tpu.pipeline_mode<synchronous>, transform_indices = @transform_1, window_bounds = array<i64: 1, 32>}, {transform_indices = @transform_2, window_bounds = array<i64: 16, 32>}]} {
    %c0 = arith.constant 0 : index
    %c0_0 = arith.constant 0 : index
    %0 = vector.load %arg1[%c0, %c0_0] : memref<16x32xf32, #tpu.memory_space<vmem>>, vector<16x32xf32>
    %1 = arith.mulf %0, %0 : vector<16x32xf32>
    %cst = arith.constant dense<0.000000e+00> : vector<16xf32>
    %2 = vector.multi_reduction <add>, %1, %cst [1] : vector<16x32xf32> to vector<16xf32>
    %3 = vector.shape_cast %2 : vector<16xf32> to vector<16x1xf32>
    %cst_1 = arith.constant 3.200000e+01 : f32
    %4 = vector.broadcast %cst_1 : f32 to vector<16x1xf32>
    %5 = arith.divf %3, %4 : vector<16x1xf32>
    %cst_2 = arith.constant 9.99999997E-7 : f32
    %6 = vector.broadcast %cst_2 : f32 to vector<16x1xf32>
    %7 = arith.addf %5, %6 : vector<16x1xf32>
    %8 = math.rsqrt %7 : vector<16x1xf32>
    %9 = vector.broadcast %8 : vector<16x1xf32> to vector<16x32xf32>
    %10 = arith.mulf %0, %9 : vector<16x32xf32>
    %c0_3 = arith.constant 0 : index
    %c0_4 = arith.constant 0 : index
    %11 = vector.load %arg2[%c0_3, %c0_4] : memref<1x32xf32, #tpu.memory_space<vmem>>, vector<1x32xf32>
    %12 = vector.broadcast %11 : vector<1x32xf32> to vector<16x32xf32>
    %13 = arith.mulf %12, %10 : vector<16x32xf32>
    %c0_5 = arith.constant 0 : index
    %c0_6 = arith.constant 0 : index
    %14 = vector.load %arg3[%c0_5, %c0_6] : memref<16x32xf32, #tpu.memory_space<vmem>>, vector<16x32xf32>
    tpu.vector_store %arg3[%c0_5, %c0_6], %13 {strides = array<i32>} : memref<16x32xf32, #tpu.memory_space<vmem>>, vector<16x32xf32>,
    return
  }
  func.func @transform_0(%arg0: i32) -> (i32, i32) {
    %c0_i32 = arith.constant 0 : i32
    %c0_i32_0 = arith.constant 0 : i32
    return %arg0, %c0_i32 : i32, i32
  }
  func.func @transform_1(%arg0: i32) -> (i32, i32) {
    %c0_i32 = arith.constant 0 : i32
    %c0_i32_0 = arith.constant 0 : i32
    %c0_i32_1 = arith.constant 0 : i32
    return %c0_i32, %c0_i32_0 : i32, i32
  }
  func.func @transform_2(%arg0: i32) -> (i32, i32) {
    %c0_i32 = arith.constant 0 : i32
    %c0_i32_0 = arith.constant 0 : i32
    return %arg0, %c0_i32 : i32, i32
  }
}

</mosaic_0001>

<llo_original>
// kernel: tpu_custom_call.1
$region0: #{tpu_custom_call.1}
  #allocation0 [shape = 'u32[]', space=smem, size = 0x4, offset = 0x4, fixed_abs, tag = 'smem constant byte address 0x4 - core index']
  #allocation1 [shape = 'u32[144,128]{1,0:T(1,128)}', space=vmem, size = 0x12000, scoped, tag = 'internal scratch']
  %s0 = inlined_call_operand.hbm [shape: f32[16,32], index: 0, kind: input, shape index: {}]
  %s1 = inlined_call_operand.vmem [shape: f32[1,32], index: 1, kind: input, shape index: {}]
  %s2 = inlined_call_operand.hbm [shape: f32[16,32], index: 2, kind: output, shape index: {}]
  %s3 = sld [smem:[#allocation0]]
  $region22: #{tpu_custom_call.1} parent=0
    _
  %s5 = ssub.s32 1, %s3
  %s6 = scalar_select 0, %s5, %s3
  $region1: #{tpu_custom_call.1} parent=0
    #allocation2 [shape = 'u8[8192]{0}', space=vmem, size = 0x2000, scoped, tag = 'input window, operand 0, single buffered']
    #allocation3 [shape = 's32[1]{0}', space=sflag, size = 0x4, scoped, tag = 'scoped memory for tpu_custom_call.1']
    #allocation4 [shape = 's32[1]{0}', space=sflag, size = 0x4, scoped, tag = 'scoped memory for tpu_custom_call.1']
    #allocation5 [shape = 'u8[8192]{0}', space=vmem, size = 0x2000, scoped, tag = 'output window, operand 0, single buffered']
    %7 = vsyncpa [#allocation3], 0
    %8 = vsyncpa [#allocation4], 0
    // Predicated region
    $region2: #{tpu_custom_call.1} parent=1 // pred_check
      _
    $region3: #{tpu_custom_call.1} parent=1 // pred_check_branch
      %10 = sbr.rel (0) target = $region5
    $region4: #{tpu_custom_call.1} parent=1 // pred_region
      %s12 = ssub.s32 256, 256
      %13 = vsyncadd [#allocation3], %s12
      %s14 = sshll.u32 [#allocation2], 4
      %s15 = int_to_ptr.vmem [resolvable:$true] %s14
      %20 = dma.hbm_to_vmem [thread:$0]  %s0, 256, %s15, [#allocation3], 128, 128, 8
    $region5: #{tpu_custom_call.1} parent=1 // pred_fallthru
      _
    // Predicated region
    $region6: #{tpu_custom_call.1} parent=1 // pred_check
      _
    $region7: #{tpu_custom_call.1} parent=1 // pred_check_branch
      %22 = sbr.rel (0) target = $region9
    $region8: #{tpu_custom_call.1} parent=1 // pred_region
      _
    $region9: #{tpu_custom_call.1} parent=1 // pred_fallthru
      _
    // Predicated region
    $region10: #{tpu_custom_call.1} parent=1 // pred_check
      _
    $region11: #{tpu_custom_call.1} parent=1 // pred_check_branch
      %24 = sbr.rel (0) target = $region13
    $region12: #{tpu_custom_call.1} parent=1 // pred_region
      %25 = dma.done [#allocation3], 256
    $region13: #{tpu_custom_call.1} parent=1 // pred_fallthru
      _
    %v26 = vld [vmem:[#allocation2] sm:$0xff]
    %v27 = vld [vmem:[#allocation2 + $0x8] sm:$0xff]
    %v28 = vmul.f32 %v26, %v26
    %v29 = vmul.f32 %v27, %v27
    %vm30 = vcmask 261120
    %v31 = vsel %vm30, %v28, 0.0
    %32 = vadd.xlane.f32.xlu0 %v31
    %v33 = vpop.xlane.xlu0 %32
    %v34 = vsel %vm30, %v29, 0.0
    %35 = vadd.xlane.f32.xlu0 %v34
    %v36 = vpop.xlane.xlu0 %35
    %v37 = vrcp.pop 32.0
    %v38 = vmul.f32 %v33, %v37
    %v39 = vmul.f32 %v36, %v37
    %v40 = vadd.f32 %v38, 1e-06
    %v41 = vadd.f32 %v39, 1e-06
    %v42 = vrsqrt.pop %v40
    %v43 = vrsqrt.pop %v41
    %v44 = vmul.f32 %v26, %v42
    %v45 = vmul.f32 %v27, %v43
    %v46 = vld [vmem:[%s1] sm:$0x1]
    %v48 = vlaneseq
    %v49 = vshrl.u32 %v48, 7
    %v50 = vsub.s32 0, %v49
    %v51 = vrot.slane %v46, %v50
    %v53 = vmul.f32 %v51, %v44
    %v54 = vmul.f32 %v51, %v45
    %55 = vst.msk [vmem:[#allocation5] sm:$0xff] %vm30, %v53
    %56 = vst.msk [vmem:[#allocation5 + $0x8] sm:$0xff] %vm30, %v54
    // Predicated region
    $region14: #{tpu_custom_call.1} parent=1 // pred_check
      _
    $region15: #{tpu_custom_call.1} parent=1 // pred_check_branch
      %58 = sbr.rel (0) target = $region17
    $region16: #{tpu_custom_call.1} parent=1 // pred_region
      %s60 = ssub.s32 256, 256
      %61 = vsyncadd [#allocation4], %s60
      %s62 = sshll.u32 [#allocation5], 4
      %s63 = int_to_ptr.vmem [resolvable:$true] %s62
      %68 = dma.vmem_to_hbm [thread:$0]  %s63, 256, %s2, [#allocation4], 128, 128, 8
    $region17: #{tpu_custom_call.1} parent=1 // pred_fallthru
      _
    // Predicated region
    $region18: #{tpu_custom_call.1} parent=1 // pred_check
      _
    $region19: #{tpu_custom_call.1} parent=1 // pred_check_branch
      %70 = sbr.rel (0) target = $region21
    $region20: #{tpu_custom_call.1} parent=1 // pred_region
      %71 = dma.done [#allocation4], 256
    $region21: #{tpu_custom_call.1} parent=1 // pred_fallthru
      _
    %72 = vsyncpa [#allocation3], 1
    %73 = vsyncpa [#allocation4], 1

</llo_original>
